<compile_context>
chip_gen: v6e
topology: v6e:2x2x1
jax: 0.10.0
libtpu: 0.0.40
codegen_flags: <defaults>
</compile_context>

<pallas_src>
import functools

import jax
import jax.numpy as jnp
import numpy as np
from jax.experimental import pallas as pl
from jax.experimental.pallas import tpu as pltpu

EPS = 1e-5
_ROW_TILE_CAP = 512                 # rows/block; drop to 256 on v7x if the
                                    # resident [W1|W3] slab is very wide.
_VMEM_LIMIT = 48 * 1024 * 1024      # fits v7x (64 MiB) and v5e/v6e (128 MiB).


def _round_up(n, m):
    return ((n + m - 1) // m) * m


def _row_tile(n, cap=_ROW_TILE_CAP):
    return min(cap, _round_up(n, 8))


# ------------------------------ kernel helpers ------------------------------ #

def _xw(x, w):
    """x @ w; tiny contraction dims use VPU broadcast-FMAs (MXU would be idle)."""
    k = x.shape[-1]
    if k <= 8:
        acc = x[:, 0:1] * w[0:1, :]
        for i in range(1, k):
            acc = acc + x[:, i:i + 1] * w[i:i + 1, :]
        return acc
    return jnp.dot(x, w, preferred_element_type=jnp.float32)


def _layernorm(x, w, b):
    mean = jnp.mean(x, axis=-1, keepdims=True)
    var = jnp.mean((x - mean) ** 2, axis=-1, keepdims=True)
    return (x - mean) * jax.lax.rsqrt(var + EPS) * w + b


def _resblock_math(xs, ws13, b13, w2, b2, lnw, lnb, hidden_dim):
    """LN( relu(x@W1+b1)@W2+b2 + x@W3+b3 ), with [W1|W3] fused and split-K xs."""
    z = _xw(xs[0], ws13[0])
    for x, w in zip(xs[1:], ws13[1:]):
        z = z + _xw(x, w)
    z = z + b13
    h = jnp.maximum(z[:, :hidden_dim], 0.0)     # relu(fc1)
    skip = z[:, hidden_dim:]                    # fc3 branch
    # TODO(synk): dropout omitted — forward reproduced in eval mode (identity).
    out = jnp.dot(h, w2, preferred_element_type=jnp.float32) + b2 + skip
    return _layernorm(out, lnw, lnb)


def _resblock1_kernel(x_ref, w13_ref, b13_ref, w2_ref, b2_ref,
                      lnw_ref, lnb_ref, o_ref, *, hidden_dim):
    o_ref[...] = _resblock_math(
        [x_ref[...]], [w13_ref[...]], b13_ref[...], w2_ref[...], b2_ref[...],
        lnw_ref[...], lnb_ref[...], hidden_dim).astype(o_ref.dtype)


def _resblock2_kernel(x1_ref, x2_ref, w13a_ref, w13b_ref, b13_ref, w2_ref,
                      b2_ref, lnw_ref, lnb_ref, o_ref, *, hidden_dim):
    o_ref[...] = _resblock_math(
        [x1_ref[...], x2_ref[...]], [w13a_ref[...], w13b_ref[...]],
        b13_ref[...], w2_ref[...], b2_ref[...], lnw_ref[...], lnb_ref[...],
        hidden_dim).astype(o_ref.dtype)


def _enc_dec_kernel(x1_ref, x2_ref,
                    ew13a_ref, ew13b_ref, eb13_ref, ew2_ref, eb2_ref,
                    elnw_ref, elnb_ref,
                    dw13_ref, db13_ref, dw2_ref, db2_ref, dlnw_ref, dlnb_ref,
                    o_ref, *, enc_hidden, dec_hidden):
    """encoders + decoders fused: same row tiling, (B, hidden) never hits HBM."""
    hidden = _resblock_math(
        [x1_ref[...], x2_ref[...]], [ew13a_ref[...], ew13b_ref[...]],
        eb13_ref[...], ew2_ref[...], eb2_ref[...], elnw_ref[...],
        elnb_ref[...], enc_hidden)
    decoded = _resblock_math(
        [hidden], [dw13_ref[...]], db13_ref[...], dw2_ref[...], db2_ref[...],
        dlnw_ref[...], dlnb_ref[...], dec_hidden)
    o_ref[...] = decoded.astype(o_ref.dtype)


def _prediction_kernel(lb_ref, fin_ref, w_ref, b_ref, o_ref):
    """prediction = final_decoder_output + lookback @ W_res + b_res."""
    proj = _xw(lb_ref[...], w_ref[...]) + b_ref[...]
    o_ref[...] = (fin_ref[...] + proj).astype(o_ref.dtype)


# ------------------------------ pallas wrappers ----------------------------- #

def _full_spec(a):
    shape = a.shape
    return pl.BlockSpec(shape, lambda *idx: (0,) * len(shape))


def _nbytes(arrs):
    return 4 * sum(int(np.prod(a.shape)) for a in arrs)


def resblock(xs, fp, *, hidden_dim):
    """Fused ResBlock over row-aligned input slab(s) (split-K pieces)."""
    xs = list(xs)
    assert len(xs) in (1, 2)
    n = xs[0].shape[0]
    out_dim = fp["w2"].shape[1]
    tile = _row_tile(n)
    grid = (pl.cdiv(n, tile),)

    weights = list(fp["w13"]) + [fp["b13"], fp["w2"], fp["b2"],
                                 fp["lnw"], fp["lnb"]]
    in_specs = ([pl.BlockSpec((tile, x.shape[1]), lambda i: (i, 0)) for x in xs]
                + [_full_spec(w) for w in weights])
    out_specs = pl.BlockSpec((tile, out_dim), lambda i: (i, 0))

    kernel = functools.partial(
        _resblock2_kernel if len(xs) == 2 else _resblock1_kernel,
        hidden_dim=hidden_dim)

    k_total = sum(x.shape[1] for x in xs)
    flops = 2 * n * (k_total * (hidden_dim + out_dim) + hidden_dim * out_dim)
    bytes_accessed = _nbytes(xs) + _nbytes(weights) + 4 * n * out_dim

    return pl.pallas_call(
        kernel,
        out_shape=jax.ShapeDtypeStruct((n, out_dim), jnp.float32),
        grid=grid,
        in_specs=in_specs,
        out_specs=out_specs,
        compiler_params=pltpu.CompilerParams(
            dimension_semantics=("parallel",),
            vmem_limit_bytes=_VMEM_LIMIT),
        cost_estimate=pl.CostEstimate(flops=flops, transcendentals=n,
                                      bytes_accessed=bytes_accessed),
    )(*xs, *weights)


def encode_decode(xs, enc_fp, dec_fp, *, enc_hidden, dec_hidden):
    """Encoder ResBlock (split-K inputs) + decoder ResBlock fused in one call."""
    xs = list(xs)
    assert len(xs) == 2 and len(enc_fp["w13"]) == 2 and len(dec_fp["w13"]) == 1
    n = xs[0].shape[0]
    mid_dim = enc_fp["w2"].shape[1]
    out_dim = dec_fp["w2"].shape[1]
    tile = _row_tile(n)
    grid = (pl.cdiv(n, tile),)

    weights = (list(enc_fp["w13"])
               + [enc_fp["b13"], enc_fp["w2"], enc_fp["b2"],
                  enc_fp["lnw"], enc_fp["lnb"]]
               + list(dec_fp["w13"])
               + [dec_fp["b13"], dec_fp["w2"], dec_fp["b2"],
                  dec_fp["lnw"], dec_fp["lnb"]])
    in_specs = ([pl.BlockSpec((tile, x.shape[1]), lambda i: (i, 0)) for x in xs]
                + [_full_spec(w) for w in weights])
    out_specs = pl.BlockSpec((tile, out_dim), lambda i: (i, 0))

    kernel = functools.partial(_enc_dec_kernel,
                               enc_hidden=enc_hidden, dec_hidden=dec_hidden)

    k_total = sum(x.shape[1] for x in xs)
    flops = 2 * n * (k_total * (enc_hidden + mid_dim)
                     + enc_hidden * mid_dim
                     + mid_dim * (dec_hidden + out_dim)
                     + dec_hidden * out_dim)
    bytes_accessed = _nbytes(xs) + _nbytes(weights) + 4 * n * out_dim

    return pl.pallas_call(
        kernel,
        out_shape=jax.ShapeDtypeStruct((n, out_dim), jnp.float32),
        grid=grid,
        in_specs=in_specs,
        out_specs=out_specs,
        compiler_params=pltpu.CompilerParams(
            dimension_semantics=("parallel",),
            vmem_limit_bytes=_VMEM_LIMIT),
        cost_estimate=pl.CostEstimate(flops=flops, transcendentals=2 * n,
                                      bytes_accessed=bytes_accessed),
    )(*xs, *weights)


def prediction_head(lookback, fin, w, b):
    B, L = lookback.shape
    H = w.shape[1]
    tile = _row_tile(B)
    grid = (pl.cdiv(B, tile),)
    return pl.pallas_call(
        _prediction_kernel,
        out_shape=jax.ShapeDtypeStruct((B, H), jnp.float32),
        grid=grid,
        in_specs=[pl.BlockSpec((tile, L), lambda i: (i, 0)),
                  pl.BlockSpec((tile, H), lambda i: (i, 0)),
                  _full_spec(w), _full_spec(b)],
        out_specs=pl.BlockSpec((tile, H), lambda i: (i, 0)),
        compiler_params=pltpu.CompilerParams(
            dimension_semantics=("parallel",),
            vmem_limit_bytes=_VMEM_LIMIT),
        cost_estimate=pl.CostEstimate(
            flops=2 * B * L * H + B * H,
            transcendentals=0,
            bytes_accessed=4 * (B * L + L * H + H + 2 * B * H)),
    )(lookback, fin, w, b)


# --------------------------- parameter construction ------------------------- #

def _init_linear(key, in_dim, out_dim):
    kw, kb = jax.random.split(key)
    s = 1.0 / np.sqrt(in_dim)
    w = jax.random.uniform(kw, (in_dim, out_dim), jnp.float32, -s, s)
    b = jax.random.uniform(kb, (1, out_dim), jnp.float32, -s, s)
    return w, b


def _init_resblock(key, in_dim, hidden_dim, out_dim):
    k1, k2, k3 = jax.random.split(key, 3)
    w1, b1 = _init_linear(k1, in_dim, hidden_dim)
    w2, b2 = _init_linear(k2, hidden_dim, out_dim)
    w3, b3 = _init_linear(k3, in_dim, out_dim)
    return {"w1": w1, "b1": b1, "w2": w2, "b2": b2, "w3": w3, "b3": b3,
            "lnw": jnp.ones((1, out_dim), jnp.float32),
            "lnb": jnp.zeros((1, out_dim), jnp.float32)}


def init_tide_params(key, L, H, feature_dim, feature_encode_dim,
                     decode_dim, hidden_dim):
    flatten_dim = L + (L + H) * feature_encode_dim
    keys = jax.random.split(key, 5)
    res_w, res_b = _init_linear(keys[4], L, H)
    return {
        "feature_encoder": _init_resblock(keys[0], feature_dim, 768, feature_encode_dim),
        "encoders":        _init_resblock(keys[1], flatten_dim, 768, hidden_dim),
        "decoders":        _init_resblock(keys[2], hidden_dim, 768, decode_dim * H),
        "final_decoder":   _init_resblock(keys[3], decode_dim + feature_encode_dim, 768, 1),
        "residual_w": res_w, "residual_b": res_b,
    }


def _fuse_resblock(p, splits=None):
    """Column-fuse [W1|W3]/[b1|b3]; optionally split rows at concat boundaries."""
    w13 = jnp.concatenate([p["w1"], p["w3"]], axis=1)
    b13 = jnp.concatenate([p["b1"], p["b3"]], axis=1)
    if splits is None:
        slabs = [w13]
    else:
        slabs, start = [], 0
        for s in splits:
            slabs.append(w13[start:start + s])
            start += s
    return {"w13": slabs, "b13": b13, "w2": p["w2"], "b2": p["b2"],
            "lnw": p["lnw"], "lnb": p["lnb"]}


def prepare_tide_params(params, L, H):
    """One-time host-side weight fusion / split-K layout for the Pallas path."""
    fe = params["feature_encoder"]["w2"].shape[1]
    LH = L + H
    decode_dim = params["decoders"]["w2"].shape[1] // H
    return {
        "feature_encoder": _fuse_resblock(params["feature_encoder"]),
        "encoders": _fuse_resblock(params["encoders"], splits=[L, LH * fe]),
        "decoders": _fuse_resblock(params["decoders"]),
        "final_decoder": _fuse_resblock(params["final_decoder"],
                                        splits=[fe, decode_dim]),
        "residual_w": params["residual_w"], "residual_b": params["residual_b"],
        "hidden": {k: params[k]["w1"].shape[1]
                   for k in ("feature_encoder", "encoders", "decoders",
                             "final_decoder")},
        "fe_dim": fe, "decode_dim": decode_dim,
    }


# ------------------------------- TiDE forward ------------------------------- #

def tide_forward(fused, lookback, dynamic, L, H):
    B, LH, F = dynamic.shape
    fe = fused["fe_dim"]
    decode_dim = fused["decode_dim"]
    hid = fused["hidden"]

    # feature = feature_encoder(dynamic)             : rows = B*(L+H)
    feat = resblock([dynamic.reshape(B * LH, F)], fused["feature_encoder"],
                    hidden_dim=hid["feature_encoder"])

    # decoded = decoders(encoders(cat([lookback, feature.flat])))  — one fused
    # kernel over B rows; the (B, hidden_dim) activation stays in VMEM.
    decoded = encode_decode([lookback, feat.reshape(B, LH * fe)],
                            fused["encoders"], fused["decoders"],
                            enc_hidden=hid["encoders"],
                            dec_hidden=hid["decoders"])

    # final_decoder(cat([feature[:, L:], decoded])) as split-K, rows = B*H
    feat_h = feat.reshape(B, LH, fe)[:, L:].reshape(B * H, fe)
    dec_rows = decoded.reshape(B * H, decode_dim)
    fin = resblock([feat_h, dec_rows], fused["final_decoder"],
                   hidden_dim=hid["final_decoder"])

    # prediction = fin.reshape(B, H) + lookback @ W_res + b_res
    # TODO(synk): fusing this tiny head into the final-decoder kernel needs an
    # in-kernel (B*H,1)->(B,H) sublane->lane relayout; kept as a separate call.
    return prediction_head(lookback, fin.reshape(B, H),
                           fused["residual_w"], fused["residual_b"])


# ---------------------------- pure-JAX reference ---------------------------- #

def _resblock_ref(x, p):
    h = jnp.maximum(x @ p["w1"] + p["b1"], 0.0)
    out = h @ p["w2"] + p["b2"] + x @ p["w3"] + p["b3"]
    mean = out.mean(-1, keepdims=True)
    var = ((out - mean) ** 2).mean(-1, keepdims=True)
    return (out - mean) / jnp.sqrt(var + EPS) * p["lnw"] + p["lnb"]


def tide_forward_ref(params, lookback, dynamic, L, H, decode_dim):
    B, LH, F = dynamic.shape
    feature = _resblock_ref(dynamic.reshape(B * LH, F),
                            params["feature_encoder"]).reshape(B, LH, -1)
    fe_dim = feature.shape[-1]
    hidden = _resblock_ref(
        jnp.concatenate([lookback, feature.reshape(B, -1)], axis=-1),
        params["encoders"])
    decoded = _resblock_ref(hidden, params["decoders"]).reshape(B, H, decode_dim)
    fin_in = jnp.concatenate([feature[:, L:], decoded], axis=-1)
    fin_out = _resblock_ref(fin_in.reshape(B * H, fe_dim + decode_dim),
                            params["final_decoder"]).reshape(B, H)
    return fin_out + lookback @ params["residual_w"] + params["residual_b"]


# ------------------------------------ main ----------------------------------- #

if __name__ == "__main__":
    B, L, H = 2, 8, 4
    feature_dim, feature_encode_dim = 4, 2
    decode_dim, hidden_dim = 2, 32

    key = jax.random.PRNGKey(0)
    kp, kl, kd = jax.random.split(key, 3)

    params = init_tide_params(kp, L, H, feature_dim, feature_encode_dim,
                              decode_dim, hidden_dim)
    lookback = jax.random.normal(kl, (B, L), jnp.float32)
    dynamic = jax.random.normal(kd, (B, L + H, feature_dim), jnp.float32)

    fused = prepare_tide_params(params, L, H)
    pred = tide_forward(fused, lookback, dynamic, L, H)
    pred = jax.block_until_ready(pred)

    ref = tide_forward_ref(params, lookback, dynamic, L, H, decode_dim)
    assert pred.shape == (B, H), pred.shape
    np.testing.assert_allclose(np.asarray(pred), np.asarray(ref),
                               rtol=1e-4, atol=1e-4)
    print("KERNEL_OK")
</pallas_src>

<mosaic_0001>
module attributes {stable_mosaic.version = 11 : i64} {
  func.func @_resblock1_kernel(%arg0: i32, %arg1: memref<24x4xf32, #tpu.memory_space<vmem>>, %arg2: memref<4x770xf32, #tpu.memory_space<vmem>>, %arg3: memref<1x770xf32, #tpu.memory_space<vmem>>, %arg4: memref<768x2xf32, #tpu.memory_space<vmem>>, %arg5: memref<1x2xf32, #tpu.memory_space<vmem>>, %arg6: memref<1x2xf32, #tpu.memory_space<vmem>>, %arg7: memref<1x2xf32, #tpu.memory_space<vmem>>, %arg8: memref<24x2xf32, #tpu.memory_space<vmem>>) attributes {dimension_semantics = [#tpu.dimension_semantics<parallel>], iteration_bounds = array<i64: 1>, scalar_prefetch = 0 : i64, scratch_operands = 0 : i64, tpu.core_type = #tpu.core_type<tc>, window_params = [{transform_indices = @transform_0, window_bounds = array<i64: 24, 4>}, {pipeline_mode = #tpu.pipeline_mode<synchronous>, transform_indices = @transform_1, window_bounds = array<i64: 4, 770>}, {pipeline_mode = #tpu.pipeline_mode<synchronous>, transform_indices = @transform_2, window_bounds = array<i64: 1, 770>}, {pipeline_mode = #tpu.pipeline_mode<synchronous>, transform_indices = @transform_3, window_bounds = array<i64: 768, 2>}, {pipeline_mode = #tpu.pipeline_mode<synchronous>, transform_indices = @transform_4, window_bounds = array<i64: 1, 2>}, {pipeline_mode = #tpu.pipeline_mode<synchronous>, transform_indices = @transform_5, window_bounds = array<i64: 1, 2>}, {pipeline_mode = #tpu.pipeline_mode<synchronous>, transform_indices = @transform_6, window_bounds = array<i64: 1, 2>}, {transform_indices = @transform_7, window_bounds = array<i64: 24, 2>}]} {
    %c0 = arith.constant 0 : index
    %c0_0 = arith.constant 0 : index
    %0 = vector.load %arg1[%c0, %c0_0] : memref<24x4xf32, #tpu.memory_space<vmem>>, vector<24x4xf32>
    %c0_1 = arith.constant 0 : index
    %c0_2 = arith.constant 0 : index
    %1 = vector.load %arg2[%c0_1, %c0_2] : memref<4x770xf32, #tpu.memory_space<vmem>>, vector<4x770xf32>
    %c0_3 = arith.constant 0 : index
    %c0_4 = arith.constant 0 : index
    %2 = vector.load %arg3[%c0_3, %c0_4] : memref<1x770xf32, #tpu.memory_space<vmem>>, vector<1x770xf32>
    %c0_5 = arith.constant 0 : index
    %c0_6 = arith.constant 0 : index
    %3 = vector.load %arg4[%c0_5, %c0_6] : memref<768x2xf32, #tpu.memory_space<vmem>>, vector<768x2xf32>
    %c0_7 = arith.constant 0 : index
    %c0_8 = arith.constant 0 : index
    %4 = vector.load %arg5[%c0_7, %c0_8] : memref<1x2xf32, #tpu.memory_space<vmem>>, vector<1x2xf32>
    %c0_9 = arith.constant 0 : index
    %c0_10 = arith.constant 0 : index
    %5 = vector.load %arg6[%c0_9, %c0_10] : memref<1x2xf32, #tpu.memory_space<vmem>>, vector<1x2xf32>
    %c0_11 = arith.constant 0 : index
    %c0_12 = arith.constant 0 : index
    %6 = vector.load %arg7[%c0_11, %c0_12] : memref<1x2xf32, #tpu.memory_space<vmem>>, vector<1x2xf32>
    %7 = vector.extract_strided_slice %0 {offsets = [0, 0], sizes = [24, 1], strides = [1, 1]} : vector<24x4xf32> to vector<24x1xf32>
    %8 = vector.extract_strided_slice %1 {offsets = [0, 0], sizes = [1, 770], strides = [1, 1]} : vector<4x770xf32> to vector<1x770xf32>
    %9 = vector.broadcast %7 : vector<24x1xf32> to vector<24x770xf32>
    %10 = vector.broadcast %8 : vector<1x770xf32> to vector<24x770xf32>
    %11 = arith.mulf %9, %10 : vector<24x770xf32>
    %12 = vector.extract_strided_slice %0 {offsets = [0, 1], sizes = [24, 1], strides = [1, 1]} : vector<24x4xf32> to vector<24x1xf32>
    %13 = vector.extract_strided_slice %1 {offsets = [1, 0], sizes = [1, 770], strides = [1, 1]} : vector<4x770xf32> to vector<1x770xf32>
    %14 = vector.broadcast %12 : vector<24x1xf32> to vector<24x770xf32>
    %15 = vector.broadcast %13 : vector<1x770xf32> to vector<24x770xf32>
    %16 = arith.mulf %14, %15 : vector<24x770xf32>
    %17 = arith.addf %11, %16 : vector<24x770xf32>
    %18 = vector.extract_strided_slice %0 {offsets = [0, 2], sizes = [24, 1], strides = [1, 1]} : vector<24x4xf32> to vector<24x1xf32>
    %19 = vector.extract_strided_slice %1 {offsets = [2, 0], sizes = [1, 770], strides = [1, 1]} : vector<4x770xf32> to vector<1x770xf32>
    %20 = vector.broadcast %18 : vector<24x1xf32> to vector<24x770xf32>
    %21 = vector.broadcast %19 : vector<1x770xf32> to vector<24x770xf32>
    %22 = arith.mulf %20, %21 : vector<24x770xf32>
    %23 = arith.addf %17, %22 : vector<24x770xf32>
    %24 = vector.extract_strided_slice %0 {offsets = [0, 3], sizes = [24, 1], strides = [1, 1]} : vector<24x4xf32> to vector<24x1xf32>
    %25 = vector.extract_strided_slice %1 {offsets = [3, 0], sizes = [1, 770], strides = [1, 1]} : vector<4x770xf32> to vector<1x770xf32>
    %26 = vector.broadcast %24 : vector<24x1xf32> to vector<24x770xf32>
    %27 = vector.broadcast %25 : vector<1x770xf32> to vector<24x770xf32>
    %28 = arith.mulf %26, %27 : vector<24x770xf32>
    %29 = arith.addf %23, %28 : vector<24x770xf32>
    %30 = vector.broadcast %2 : vector<1x770xf32> to vector<24x770xf32>
    %31 = arith.addf %29, %30 : vector<24x770xf32>
    %32 = vector.extract_strided_slice %31 {offsets = [0, 0], sizes = [24, 768], strides = [1, 1]} : vector<24x770xf32> to vector<24x768xf32>
    %cst = arith.constant 0.000000e+00 : f32
    %33 = vector.broadcast %cst : f32 to vector<24x768xf32>
    %34 = arith.maximumf %32, %33 : vector<24x768xf32>
    %35 = vector.extract_strided_slice %31 {offsets = [0, 768], sizes = [24, 2], strides = [1, 1]} : vector<24x770xf32> to vector<24x2xf32>
    %cst_13 = arith.constant dense<0.000000e+00> : vector<24x2xf32>
    %36 = tpu.matmul %34, %3, %cst_13 {dimension_numbers = #tpu.dot_dimension_numbers<[1], [0], [0], [1], [0, 0, 1, 1], [], []>} : vector<24x768xf32>, vector<768x2xf32>, vector<24x2xf32> -> vector<24x2xf32>
    %37 = vector.broadcast %4 : vector<1x2xf32> to vector<24x2xf32>
    %38 = arith.addf %36, %37 : vector<24x2xf32>
    %39 = arith.addf %38, %35 : vector<24x2xf32>
    %cst_14 = arith.constant dense<0.000000e+00> : vector<24xf32>
    %40 = vector.multi_reduction <add>, %39, %cst_14 [1] : vector<24x2xf32> to vector<24xf32>
    %41 = vector.shape_cast %40 : vector<24xf32> to vector<24x1xf32>
    %cst_15 = arith.constant 2.000000e+00 : f32
    %42 = vector.broadcast %cst_15 : f32 to vector<24x1xf32>
    %43 = arith.divf %41, %42 : vector<24x1xf32>
    %44 = vector.broadcast %43 : vector<24x1xf32> to vector<24x2xf32>
    %45 = arith.subf %39, %44 : vector<24x2xf32>
    %46 = arith.mulf %45, %45 : vector<24x2xf32>
    %cst_16 = arith.constant dense<0.000000e+00> : vector<24xf32>
    %47 = vector.multi_reduction <add>, %46, %cst_16 [1] : vector<24x2xf32> to vector<24xf32>
    %48 = vector.shape_cast %47 : vector<24xf32> to vector<24x1xf32>
    %cst_17 = arith.constant 2.000000e+00 : f32
    %49 = vector.broadcast %cst_17 : f32 to vector<24x1xf32>
    %50 = arith.divf %48, %49 : vector<24x1xf32>
    %51 = vector.broadcast %43 : vector<24x1xf32> to vector<24x2xf32>
    %52 = arith.subf %39, %51 : vector<24x2xf32>
    %cst_18 = arith.constant 9.99999974E-6 : f32
    %53 = vector.broadcast %cst_18 : f32 to vector<24x1xf32>
    %54 = arith.addf %50, %53 : vector<24x1xf32>
    %55 = math.rsqrt %54 : vector<24x1xf32>
    %56 = vector.broadcast %55 : vector<24x1xf32> to vector<24x2xf32>
    %57 = arith.mulf %52, %56 : vector<24x2xf32>
    %58 = vector.broadcast %5 : vector<1x2xf32> to vector<24x2xf32>
    %59 = arith.mulf %57, %58 : vector<24x2xf32>
    %60 = vector.broadcast %6 : vector<1x2xf32> to vector<24x2xf32>
    %61 = arith.addf %59, %60 : vector<24x2xf32>
    %c0_19 = arith.constant 0 : index
    %c0_20 = arith.constant 0 : index
    %62 = vector.load %arg8[%c0_19, %c0_20] : memref<24x2xf32, #tpu.memory_space<vmem>>, vector<24x2xf32>
    tpu.vector_store %arg8[%c0_19, %c0_20], %61 {strides = array<i32>} : memref<24x2xf32, #tpu.memory_space<vmem>>, vector<24x2xf32>,
    return
  }
  func.func @transform_0(%arg0: i32) -> (i32, i32) {
    %c0_i32 = arith.constant 0 : i32
    %c0_i32_0 = arith.constant 0 : i32
    return %arg0, %c0_i32 : i32, i32
  }
  func.func @transform_1(%arg0: i32) -> (i32, i32) {
    %c0_i32 = arith.constant 0 : i32
    %c0_i32_0 = arith.constant 0 : i32
    %c0_i32_1 = arith.constant 0 : i32
    return %c0_i32, %c0_i32_0 : i32, i32
  }
  func.func @transform_2(%arg0: i32) -> (i32, i32) {
    %c0_i32 = arith.constant 0 : i32
    %c0_i32_0 = arith.constant 0 : i32
    %c0_i32_1 = arith.constant 0 : i32
    return %c0_i32, %c0_i32_0 : i32, i32
  }
  func.func @transform_3(%arg0: i32) -> (i32, i32) {
    %c0_i32 = arith.constant 0 : i32
    %c0_i32_0 = arith.constant 0 : i32
    %c0_i32_1 = arith.constant 0 : i32
    return %c0_i32, %c0_i32_0 : i32, i32
  }
  func.func @transform_4(%arg0: i32) -> (i32, i32) {
    %c0_i32 = arith.constant 0 : i32
    %c0_i32_0 = arith.constant 0 : i32
    %c0_i32_1 = arith.constant 0 : i32
    return %c0_i32, %c0_i32_0 : i32, i32
  }
  func.func @transform_5(%arg0: i32) -> (i32, i32) {
    %c0_i32 = arith.constant 0 : i32
    %c0_i32_0 = arith.constant 0 : i32
    %c0_i32_1 = arith.constant 0 : i32
    return %c0_i32, %c0_i32_0 : i32, i32
  }
  func.func @transform_6(%arg0: i32) -> (i32, i32) {
    %c0_i32 = arith.constant 0 : i32
    %c0_i32_0 = arith.constant 0 : i32
    %c0_i32_1 = arith.constant 0 : i32
    return %c0_i32, %c0_i32_0 : i32, i32
  }
  func.func @transform_7(%arg0: i32) -> (i32, i32) {
    %c0_i32 = arith.constant 0 : i32
    %c0_i32_0 = arith.constant 0 : i32
    return %arg0, %c0_i32 : i32, i32
  }
}

</mosaic_0001>

<llo_original>
// kernel: tpu_custom_call.1
$region0: #{tpu_custom_call.1}
  #allocation0 [shape = 'u32[]', space=smem, size = 0x4, offset = 0x4, fixed_abs, tag = 'smem constant byte address 0x4 - core index']
  #allocation1 [shape = 'u32[144,128]{1,0:T(1,128)}', space=vmem, size = 0x12000, scoped, tag = 'internal scratch']
  %s0 = inlined_call_operand.vmem [shape: f32[24,4], index: 0, kind: input, shape index: {}]
  %s1 = inlined_call_operand.vmem [shape: f32[4,770], index: 1, kind: input, shape index: {}]
  %s2 = inlined_call_operand.vmem [shape: f32[1,770], index: 2, kind: input, shape index: {}]
  %s3 = inlined_call_operand.vmem [shape: f32[768,2], index: 3, kind: input, shape index: {}]
  %s4 = inlined_call_operand.vmem [shape: f32[1,2], index: 4, kind: input, shape index: {}]
  %s5 = inlined_call_operand.vmem [shape: f32[1,2], index: 5, kind: input, shape index: {}]
  %s6 = inlined_call_operand.vmem [shape: f32[1,2], index: 6, kind: input, shape index: {}]
  %s7 = inlined_call_operand.vmem [shape: f32[24,2], index: 7, kind: output, shape index: {}]
  %s8 = sld [smem:[#allocation0]]
  $region38: #{tpu_custom_call.1} parent=0
    _
  %s10 = ssub.s32 1, %s8
  %s11 = scalar_select 0, %s10, %s8
  // Predicated region
  $region2: #{tpu_custom_call.1} parent=0 // pred_check
    _
  $region3: #{tpu_custom_call.1} parent=0 // pred_check_branch
    %13 = sbr.rel (0) target = $region5
  $region4: #{tpu_custom_call.1} parent=0 // pred_region
    _
  $region5: #{tpu_custom_call.1} parent=0 // pred_fallthru
    _
  // Predicated region
  $region6: #{tpu_custom_call.1} parent=0 // pred_check
    _
  $region7: #{tpu_custom_call.1} parent=0 // pred_check_branch
    %15 = sbr.rel (0) target = $region9
  $region8: #{tpu_custom_call.1} parent=0 // pred_region
    _
  $region9: #{tpu_custom_call.1} parent=0 // pred_fallthru
    _
  // Predicated region
  $region10: #{tpu_custom_call.1} parent=0 // pred_check
    _
  $region11: #{tpu_custom_call.1} parent=0 // pred_check_branch
    %17 = sbr.rel (0) target = $region13
  $region12: #{tpu_custom_call.1} parent=0 // pred_region
    _
  $region13: #{tpu_custom_call.1} parent=0 // pred_fallthru
    _
  // Predicated region
  $region14: #{tpu_custom_call.1} parent=0 // pred_check
    _
  $region15: #{tpu_custom_call.1} parent=0 // pred_check_branch
    %19 = sbr.rel (0) target = $region17
  $region16: #{tpu_custom_call.1} parent=0 // pred_region
    _
  $region17: #{tpu_custom_call.1} parent=0 // pred_fallthru
    _
  // Predicated region
  $region18: #{tpu_custom_call.1} parent=0 // pred_check
    _
  $region19: #{tpu_custom_call.1} parent=0 // pred_check_branch
    %21 = sbr.rel (0) target = $region21
  $region20: #{tpu_custom_call.1} parent=0 // pred_region
    _
  $region21: #{tpu_custom_call.1} parent=0 // pred_fallthru
    _
  // Predicated region
  $region22: #{tpu_custom_call.1} parent=0 // pred_check
    _
  $region23: #{tpu_custom_call.1} parent=0 // pred_check_branch
    %23 = sbr.rel (0) target = $region25
  $region24: #{tpu_custom_call.1} parent=0 // pred_region
    _
  $region25: #{tpu_custom_call.1} parent=0 // pred_fallthru
    _
  // Predicated region
  $region26: #{tpu_custom_call.1} parent=0 // pred_check
    _
  $region27: #{tpu_custom_call.1} parent=0 // pred_check_branch
    %25 = sbr.rel (0) target = $region29
  $region28: #{tpu_custom_call.1} parent=0 // pred_region
    _
  $region29: #{tpu_custom_call.1} parent=0 // pred_fallthru
    _
  %v26 = vld [vmem:[%s0] sm:$0xff]
  %v27 = vld [vmem:[%s0 + $0x8] sm:$0xff]
  %v28 = vld [vmem:[%s0 + $0x10] sm:$0xff]
  %v29 = vld [vmem:[%s1] sm:$0xff]
  %v30 = vld [vmem:[%s1 + $0x8] sm:$0xff]
  %v31 = vld [vmem:[%s1 + $0x10] sm:$0xff]
  %v32 = vld [vmem:[%s1 + $0x18] sm:$0xf]
  %v33 = vld [vmem:[%s2] sm:$0x7f]
  %v34 = vld [vmem:[%s3] sm:$0xff]
  %v35 = vld [vmem:[%s3 + $0x8] sm:$0xff]
  %v36 = vld [vmem:[%s3 + $0x10] sm:$0xff]
  %v37 = vld [vmem:[%s3 + $0x18] sm:$0xff]
  %v38 = vld [vmem:[%s3 + $0x20] sm:$0xff]
  %v39 = vld [vmem:[%s3 + $0x28] sm:$0xff]
  %v40 = vld [vmem:[%s3 + $0x30] sm:$0xff]
  %v41 = vld [vmem:[%s3 + $0x38] sm:$0xff]
  %v42 = vld [vmem:[%s3 + $0x40] sm:$0xff]
  %v43 = vld [vmem:[%s3 + $0x48] sm:$0xff]
  %v44 = vld [vmem:[%s3 + $0x50] sm:$0xff]
  %v45 = vld [vmem:[%s3 + $0x58] sm:$0xff]
  %v46 = vld [vmem:[%s3 + $0x60] sm:$0xff]
  %v47 = vld [vmem:[%s3 + $0x68] sm:$0xff]
  %v48 = vld [vmem:[%s3 + $0x70] sm:$0xff]
  %v49 = vld [vmem:[%s3 + $0x78] sm:$0xff]
  %v50 = vld [vmem:[%s3 + $0x80] sm:$0xff]
  %v51 = vld [vmem:[%s3 + $0x88] sm:$0xff]
  %v52 = vld [vmem:[%s3 + $0x90] sm:$0xff]
  %v53 = vld [vmem:[%s3 + $0x98] sm:$0xff]
  %v54 = vld [vmem:[%s3 + $0xa0] sm:$0xff]
  %v55 = vld [vmem:[%s3 + $0xa8] sm:$0xff]
  %v56 = vld [vmem:[%s3 + $0xb0] sm:$0xff]
  %v57 = vld [vmem:[%s3 + $0xb8] sm:$0xff]
  %v58 = vld [vmem:[%s3 + $0xc0] sm:$0xff]
  %v59 = vld [vmem:[%s3 + $0xc8] sm:$0xff]
  %v60 = vld [vmem:[%s3 + $0xd0] sm:$0xff]
  %v61 = vld [vmem:[%s3 + $0xd8] sm:$0xff]
  %v62 = vld [vmem:[%s3 + $0xe0] sm:$0xff]
  %v63 = vld [vmem:[%s3 + $0xe8] sm:$0xff]
  %v64 = vld [vmem:[%s3 + $0xf0] sm:$0xff]
  %v65 = vld [vmem:[%s3 + $0xf8] sm:$0xff]
  %v66 = vld [vmem:[%s3 + $0x100] sm:$0xff]
  %v67 = vld [vmem:[%s3 + $0x108] sm:$0xff]
  %v68 = vld [vmem:[%s3 + $0x110] sm:$0xff]
  %v69 = vld [vmem:[%s3 + $0x118] sm:$0xff]
  %v70 = vld [vmem:[%s3 + $0x120] sm:$0xff]
  %v71 = vld [vmem:[%s3 + $0x128] sm:$0xff]
  %v72 = vld [vmem:[%s3 + $0x130] sm:$0xff]
  %v73 = vld [vmem:[%s3 + $0x138] sm:$0xff]
  %v74 = vld [vmem:[%s3 + $0x140] sm:$0xff]
  %v75 = vld [vmem:[%s3 + $0x148] sm:$0xff]
  %v76 = vld [vmem:[%s3 + $0x150] sm:$0xff]
  %v77 = vld [vmem:[%s3 + $0x158] sm:$0xff]
  %v78 = vld [vmem:[%s3 + $0x160] sm:$0xff]
  %v79 = vld [vmem:[%s3 + $0x168] sm:$0xff]
  %v80 = vld [vmem:[%s3 + $0x170] sm:$0xff]
  %v81 = vld [vmem:[%s3 + $0x178] sm:$0xff]
  %v82 = vld [vmem:[%s3 + $0x180] sm:$0xff]
  %v83 = vld [vmem:[%s3 + $0x188] sm:$0xff]
  %v84 = vld [vmem:[%s3 + $0x190] sm:$0xff]
  %v85 = vld [vmem:[%s3 + $0x198] sm:$0xff]
  %v86 = vld [vmem:[%s3 + $0x1a0] sm:$0xff]
  %v87 = vld [vmem:[%s3 + $0x1a8] sm:$0xff]
  %v88 = vld [vmem:[%s3 + $0x1b0] sm:$0xff]
  %v89 = vld [vmem:[%s3 + $0x1b8] sm:$0xff]
  %v90 = vld [vmem:[%s3 + $0x1c0] sm:$0xff]
  %v91 = vld [vmem:[%s3 + $0x1c8] sm:$0xff]
  %v92 = vld [vmem:[%s3 + $0x1d0] sm:$0xff]
  %v93 = vld [vmem:[%s3 + $0x1d8] sm:$0xff]
  %v94 = vld [vmem:[%s3 + $0x1e0] sm:$0xff]
  %v95 = vld [vmem:[%s3 + $0x1e8] sm:$0xff]
  %v96 = vld [vmem:[%s3 + $0x1f0] sm:$0xff]
  %v97 = vld [vmem:[%s3 + $0x1f8] sm:$0xff]
  %v98 = vld [vmem:[%s3 + $0x200] sm:$0xff]
  %v99 = vld [vmem:[%s3 + $0x208] sm:$0xff]
  %v100 = vld [vmem:[%s3 + $0x210] sm:$0xff]
  %v101 = vld [vmem:[%s3 + $0x218] sm:$0xff]
  %v102 = vld [vmem:[%s3 + $0x220] sm:$0xff]
  %v103 = vld [vmem:[%s3 + $0x228] sm:$0xff]
  %v104 = vld [vmem:[%s3 + $0x230] sm:$0xff]
  %v105 = vld [vmem:[%s3 + $0x238] sm:$0xff]
  %v106 = vld [vmem:[%s3 + $0x240] sm:$0xff]
  %v107 = vld [vmem:[%s3 + $0x248] sm:$0xff]
  %v108 = vld [vmem:[%s3 + $0x250] sm:$0xff]
  %v109 = vld [vmem:[%s3 + $0x258] sm:$0xff]
  %v110 = vld [vmem:[%s3 + $0x260] sm:$0xff]
  %v111 = vld [vmem:[%s3 + $0x268] sm:$0xff]
  %v112 = vld [vmem:[%s3 + $0x270] sm:$0xff]
  %v113 = vld [vmem:[%s3 + $0x278] sm:$0xff]
  %v114 = vld [vmem:[%s3 + $0x280] sm:$0xff]
  %v115 = vld [vmem:[%s3 + $0x288] sm:$0xff]
  %v116 = vld [vmem:[%s3 + $0x290] sm:$0xff]
  %v117 = vld [vmem:[%s3 + $0x298] sm:$0xff]
  %v118 = vld [vmem:[%s3 + $0x2a0] sm:$0xff]
  %v119 = vld [vmem:[%s3 + $0x2a8] sm:$0xff]
  %v120 = vld [vmem:[%s3 + $0x2b0] sm:$0xff]
  %v121 = vld [vmem:[%s3 + $0x2b8] sm:$0xff]
  %v122 = vld [vmem:[%s3 + $0x2c0] sm:$0xff]
  %v123 = vld [vmem:[%s3 + $0x2c8] sm:$0xff]
  %v124 = vld [vmem:[%s3 + $0x2d0] sm:$0xff]
  %v125 = vld [vmem:[%s3 + $0x2d8] sm:$0xff]
  %v126 = vld [vmem:[%s3 + $0x2e0] sm:$0xff]
  %v127 = vld [vmem:[%s3 + $0x2e8] sm:$0xff]
  %v128 = vld [vmem:[%s3 + $0x2f0] sm:$0xff]
  %v129 = vld [vmem:[%s3 + $0x2f8] sm:$0xff]
  %v130 = vld [vmem:[%s4] sm:$0x1]
  %v131 = vld [vmem:[%s5] sm:$0x1]
  %v132 = vld [vmem:[%s6] sm:$0x1]
  %134 = vset.pattern.permute.xlu0 0
  %135 = vperm.xlu0 %134, %v26
  %v136 = vpop.permute.xlu0 %135
  %139 = vset.pattern.permute.xlu0 0
  %140 = vperm.xlu0 %139, %v27
  %v141 = vpop.permute.xlu0 %140
  %144 = vset.pattern.permute.xlu0 0
  %145 = vperm.xlu0 %144, %v28
  %v146 = vpop.permute.xlu0 %145
  %v152 = vlaneseq
  %v153 = vshrl.u32 %v152, 7
  %v154 = vsub.s32 0, %v153
  %v155 = vrot.slane %v29, %v154
  %v156 = vlaneseq
  %v157 = vshrl.u32 %v156, 7
  %v158 = vsub.s32 4, %v157
  %v159 = vrot.slane %v29, %v158
  %v160 = vlaneseq
  %v161 = vshrl.u32 %v160, 7
  %v162 = vsub.s32 0, %v161
  %v163 = vrot.slane %v30, %v162
  %v164 = vlaneseq
  %v165 = vshrl.u32 %v164, 7
  %v166 = vsub.s32 4, %v165
  %v167 = vrot.slane %v30, %v166
  %v168 = vlaneseq
  %v169 = vshrl.u32 %v168, 7
  %v170 = vsub.s32 0, %v169
  %v171 = vrot.slane %v31, %v170
  %v172 = vlaneseq
  %v173 = vshrl.u32 %v172, 7
  %v174 = vsub.s32 4, %v173
  %v175 = vrot.slane %v31, %v174
  %v176 = vlaneseq
  %v177 = vshrl.u32 %v176, 7
  %v178 = vsub.s32 0, %v177
  %v179 = vrot.slane %v32, %v178
  %v187 = vlaneseq
  %v188 = vshrl.u32 %v187, 7
  %v189 = vsub.s32 0, %v188
  %v190 = vrot.slane %v155, %v189
  %v191 = vlaneseq
  %v192 = vshrl.u32 %v191, 7
  %v193 = vsub.s32 0, %v192
  %v194 = vrot.slane %v159, %v193
  %v195 = vlaneseq
  %v196 = vshrl.u32 %v195, 7
  %v197 = vsub.s32 0, %v196
  %v198 = vrot.slane %v163, %v197
  %v199 = vlaneseq
  %v200 = vshrl.u32 %v199, 7
  %v201 = vsub.s32 0, %v200
  %v202 = vrot.slane %v167, %v201
  %v203 = vlaneseq
  %v204 = vshrl.u32 %v203, 7
  %v205 = vsub.s32 0, %v204
  %v206 = vrot.slane %v171, %v205
  %v207 = vlaneseq
  %v208 = vshrl.u32 %v207, 7
  %v209 = vsub.s32 0, %v208
  %v210 = vrot.slane %v175, %v209
  %v211 = vlaneseq
  %v212 = vshrl.u32 %v211, 7
  %v213 = vsub.s32 0, %v212
  %v214 = vrot.slane %v179, %v213
  %v215 = vmul.f32 %v136, %v190
  %v216 = vmul.f32 %v136, %v194
  %v217 = vmul.f32 %v136, %v198
  %v218 = vmul.f32 %v136, %v202
  %v219 = vmul.f32 %v136, %v206
  %v220 = vmul.f32 %v136, %v210
  %v221 = vmul.f32 %v136, %v214
  %v222 = vmul.f32 %v141, %v190
  %v223 = vmul.f32 %v141, %v194
  %v224 = vmul.f32 %v141, %v198
  %v225 = vmul.f32 %v141, %v202
  %v226 = vmul.f32 %v141, %v206
  %v227 = vmul.f32 %v141, %v210
  %v228 = vmul.f32 %v141, %v214
  %v229 = vmul.f32 %v146, %v190
  %v230 = vmul.f32 %v146, %v194
  %v231 = vmul.f32 %v146, %v198
  %v232 = vmul.f32 %v146, %v202
  %v233 = vmul.f32 %v146, %v206
  %v234 = vmul.f32 %v146, %v210
  %v235 = vmul.f32 %v146, %v214
  %236 = vset.pattern.permute.xlu0 1
  %237 = vperm.xlu0 %236, %v26
  %v238 = vpop.permute.xlu0 %237
  %240 = vset.pattern.permute.xlu0 1
  %241 = vperm.xlu0 %240, %v27
  %v242 = vpop.permute.xlu0 %241
  %244 = vset.pattern.permute.xlu0 1
  %245 = vperm.xlu0 %244, %v28
  %v246 = vpop.permute.xlu0 %245
  %v248 = vlaneseq
  %v249 = vshrl.u32 %v248, 7
  %v250 = vsub.s32 1, %v249
  %v251 = vrot.slane %v29, %v250
  %v252 = vlaneseq
  %v253 = vshrl.u32 %v252, 7
  %v254 = vsub.s32 5, %v253
  %v255 = vrot.slane %v29, %v254
  %v256 = vlaneseq
  %v257 = vshrl.u32 %v256, 7
  %v258 = vsub.s32 1, %v257
  %v259 = vrot.slane %v30, %v258
  %v260 = vlaneseq
  %v261 = vshrl.u32 %v260, 7
  %v262 = vsub.s32 5, %v261
  %v263 = vrot.slane %v30, %v262
  %v264 = vlaneseq
  %v265 = vshrl.u32 %v264, 7
  %v266 = vsub.s32 1, %v265
  %v267 = vrot.slane %v31, %v266
  %v268 = vlaneseq
  %v269 = vshrl.u32 %v268, 7
  %v270 = vsub.s32 5, %v269
  %v271 = vrot.slane %v31, %v270
  %v272 = vlaneseq
  %v273 = vshrl.u32 %v272, 7
  %v274 = vsub.s32 1, %v273
  %v275 = vrot.slane %v32, %v274
  %v283 = vlaneseq
  %v284 = vshrl.u32 %v283, 7
  %v285 = vsub.s32 1, %v284
  %v286 = vrot.slane %v251, %v285
  %v287 = vlaneseq
  %v288 = vshrl.u32 %v287, 7
  %v289 = vsub.s32 1, %v288
  %v290 = vrot.slane %v255, %v289
  %v291 = vlaneseq
  %v292 = vshrl.u32 %v291, 7
  %v293 = vsub.s32 1, %v292
  %v294 = vrot.slane %v259, %v293
  %v295 = vlaneseq
  %v296 = vshrl.u32 %v295, 7
  %v297 = vsub.s32 1, %v296
  %v298 = vrot.slane %v263, %v297
  %v299 = vlaneseq
  %v300 = vshrl.u32 %v299, 7
  %v301 = vsub.s32 1, %v300
  %v302 = vrot.slane %v267, %v301
  %v303 = vlaneseq
  %v304 = vshrl.u32 %v303, 7
  %v305 = vsub.s32 1, %v304
  %v306 = vrot.slane %v271, %v305
  %v307 = vlaneseq
  %v308 = vshrl.u32 %v307, 7
  %v309 = vsub.s32 1, %v308
  %v310 = vrot.slane %v275, %v309
  %v311 = vmul.f32 %v238, %v286
  %v312 = vmul.f32 %v238, %v290
  %v313 = vmul.f32 %v238, %v294
  %v314 = vmul.f32 %v238, %v298
  %v315 = vmul.f32 %v238, %v302
  %v316 = vmul.f32 %v238, %v306
  %v317 = vmul.f32 %v238, %v310
  %v318 = vmul.f32 %v242, %v286
  %v319 = vmul.f32 %v242, %v290
  %v320 = vmul.f32 %v242, %v294
  %v321 = vmul.f32 %v242, %v298
  %v322 = vmul.f32 %v242, %v302
  %v323 = vmul.f32 %v242, %v306
  %v324 = vmul.f32 %v242, %v310
  %v325 = vmul.f32 %v246, %v286
  %v326 = vmul.f32 %v246, %v290
  %v327 = vmul.f32 %v246, %v294
  %v328 = vmul.f32 %v246, %v298
  %v329 = vmul.f32 %v246, %v302
  %v330 = vmul.f32 %v246, %v306
  %v331 = vmul.f32 %v246, %v310
  %v332 = vadd.f32 %v215, %v311
  %v333 = vadd.f32 %v216, %v312
  %v334 = vadd.f32 %v217, %v313
  %v335 = vadd.f32 %v218, %v314
  %v336 = vadd.f32 %v219, %v315
  %v337 = vadd.f32 %v220, %v316
  %v338 = vadd.f32 %v221, %v317
  %v339 = vadd.f32 %v222, %v318
  %v340 = vadd.f32 %v223, %v319
  %v341 = vadd.f32 %v224, %v320
  %v342 = vadd.f32 %v225, %v321
  %v343 = vadd.f32 %v226, %v322
  %v344 = vadd.f32 %v227, %v323
  %v345 = vadd.f32 %v228, %v324
  %v346 = vadd.f32 %v229, %v325
  %v347 = vadd.f32 %v230, %v326
  %v348 = vadd.f32 %v231, %v327
  %v349 = vadd.f32 %v232, %v328
  %v350 = vadd.f32 %v233, %v329
  %v351 = vadd.f32 %v234, %v330
  %v352 = vadd.f32 %v235, %v331
  %353 = vset.pattern.permute.xlu0 2
  %354 = vperm.xlu0 %353, %v26
  %v355 = vpop.permute.xlu0 %354
  %357 = vset.pattern.permute.xlu0 2
  %358 = vperm.xlu0 %357, %v27
  %v359 = vpop.permute.xlu0 %358
  %361 = vset.pattern.permute.xlu0 2
  %362 = vperm.xlu0 %361, %v28
  %v363 = vpop.permute.xlu0 %362
  %v365 = vlaneseq
  %v366 = vshrl.u32 %v365, 7
  %v367 = vsub.s32 2, %v366
  %v368 = vrot.slane %v29, %v367
  %v369 = vlaneseq
  %v370 = vshrl.u32 %v369, 7
  %v371 = vsub.s32 6, %v370
  %v372 = vrot.slane %v29, %v371
  %v373 = vlaneseq
  %v374 = vshrl.u32 %v373, 7
  %v375 = vsub.s32 2, %v374
  %v376 = vrot.slane %v30, %v375
  %v377 = vlaneseq
  %v378 = vshrl.u32 %v377, 7
  %v379 = vsub.s32 6, %v378
  %v380 = vrot.slane %v30, %v379
  %v381 = vlaneseq
  %v382 = vshrl.u32 %v381, 7
  %v383 = vsub.s32 2, %v382
  %v384 = vrot.slane %v31, %v383
  %v385 = vlaneseq
  %v386 = vshrl.u32 %v385, 7
  %v387 = vsub.s32 6, %v386
  %v388 = vrot.slane %v31, %v387
  %v389 = vlaneseq
  %v390 = vshrl.u32 %v389, 7
  %v391 = vsub.s32 2, %v390
  %v392 = vrot.slane %v32, %v391
  %v400 = vlaneseq
  %v401 = vshrl.u32 %v400, 7
  %v402 = vsub.s32 2, %v401
  %v403 = vrot.slane %v368, %v402
  %v404 = vlaneseq
  %v405 = vshrl.u32 %v404, 7
  %v406 = vsub.s32 2, %v405
  %v407 = vrot.slane %v372, %v406
  %v408 = vlaneseq
  %v409 = vshrl.u32 %v408, 7
  %v410 = vsub.s32 2, %v409
  %v411 = vrot.slane %v376, %v410
  %v412 = vlaneseq
  %v413 = vshrl.u32 %v412, 7
  %v414 = vsub.s32 2, %v413
  %v415 = vrot.slane %v380, %v414
  %v416 = vlaneseq
  %v417 = vshrl.u32 %v416, 7
  %v418 = vsub.s32 2, %v417
  %v419 = vrot.slane %v384, %v418
  %v420 = vlaneseq
  %v421 = vshrl.u32 %v420, 7
  %v422 = vsub.s32 2, %v421
  %v423 = vrot.slane %v388, %v422
  %v424 = vlaneseq
  %v425 = vshrl.u32 %v424, 7
  %v426 = vsub.s32 2, %v425
  %v427 = vrot.slane %v392, %v426
  %v428 = vmul.f32 %v355, %v403
  %v429 = vmul.f32 %v355, %v407
  %v430 = vmul.f32 %v355, %v411
  %v431 = vmul.f32 %v355, %v415
  %v432 = vmul.f32 %v355, %v419
  %v433 = vmul.f32 %v355, %v423
  %v434 = vmul.f32 %v355, %v427
  %v435 = vmul.f32 %v359, %v403
  %v436 = vmul.f32 %v359, %v407
  %v437 = vmul.f32 %v359, %v411
  %v438 = vmul.f32 %v359, %v415
  %v439 = vmul.f32 %v359, %v419
  %v440 = vmul.f32 %v359, %v423
  %v441 = vmul.f32 %v359, %v427
  %v442 = vmul.f32 %v363, %v403
  %v443 = vmul.f32 %v363, %v407
  %v444 = vmul.f32 %v363, %v411
  %v445 = vmul.f32 %v363, %v415
  %v446 = vmul.f32 %v363, %v419
  %v447 = vmul.f32 %v363, %v423
  %v448 = vmul.f32 %v363, %v427
  %v449 = vadd.f32 %v332, %v428
  %v450 = vadd.f32 %v333, %v429
  %v451 = vadd.f32 %v334, %v430
  %v452 = vadd.f32 %v335, %v431
  %v453 = vadd.f32 %v336, %v432
  %v454 = vadd.f32 %v337, %v433
  %v455 = vadd.f32 %v338, %v434
  %v456 = vadd.f32 %v339, %v435
  %v457 = vadd.f32 %v340, %v436
  %v458 = vadd.f32 %v341, %v437
  %v459 = vadd.f32 %v342, %v438
  %v460 = vadd.f32 %v343, %v439
  %v461 = vadd.f32 %v344, %v440
  %v462 = vadd.f32 %v345, %v441
  %v463 = vadd.f32 %v346, %v442
  %v464 = vadd.f32 %v347, %v443
  %v465 = vadd.f32 %v348, %v444
  %v466 = vadd.f32 %v349, %v445
  %v467 = vadd.f32 %v350, %v446
  %v468 = vadd.f32 %v351, %v447
  %v469 = vadd.f32 %v352, %v448
  %470 = vset.pattern.permute.xlu0 3
  %471 = vperm.xlu0 %470, %v26
  %v472 = vpop.permute.xlu0 %471
  %474 = vset.pattern.permute.xlu0 3
  %475 = vperm.xlu0 %474, %v27
  %v476 = vpop.permute.xlu0 %475
  %478 = vset.pattern.permute.xlu0 3
  %479 = vperm.xlu0 %478, %v28
  %v480 = vpop.permute.xlu0 %479
  %v482 = vlaneseq
  %v483 = vshrl.u32 %v482, 7
  %v484 = vsub.s32 3, %v483
  %v485 = vrot.slane %v29, %v484
  %v486 = vlaneseq
  %v487 = vshrl.u32 %v486, 7
  %v488 = vsub.s32 7, %v487
  %v489 = vrot.slane %v29, %v488
  %v490 = vlaneseq
  %v491 = vshrl.u32 %v490, 7
  %v492 = vsub.s32 3, %v491
  %v493 = vrot.slane %v30, %v492
  %v494 = vlaneseq
  %v495 = vshrl.u32 %v494, 7
  %v496 = vsub.s32 7, %v495
  %v497 = vrot.slane %v30, %v496
  %v498 = vlaneseq
  %v499 = vshrl.u32 %v498, 7
  %v500 = vsub.s32 3, %v499
  %v501 = vrot.slane %v31, %v500
  %v502 = vlaneseq
  %v503 = vshrl.u32 %v502, 7
  %v504 = vsub.s32 7, %v503
  %v505 = vrot.slane %v31, %v504
  %v506 = vlaneseq
  %v507 = vshrl.u32 %v506, 7
  %v508 = vsub.s32 3, %v507
  %v509 = vrot.slane %v32, %v508
  %v517 = vlaneseq
  %v518 = vshrl.u32 %v517, 7
  %v519 = vsub.s32 3, %v518
  %v520 = vrot.slane %v485, %v519
  %v521 = vlaneseq
  %v522 = vshrl.u32 %v521, 7
  %v523 = vsub.s32 3, %v522
  %v524 = vrot.slane %v489, %v523
  %v525 = vlaneseq
  %v526 = vshrl.u32 %v525, 7
  %v527 = vsub.s32 3, %v526
  %v528 = vrot.slane %v493, %v527
  %v529 = vlaneseq
  %v530 = vshrl.u32 %v529, 7
  %v531 = vsub.s32 3, %v530
  %v532 = vrot.slane %v497, %v531
  %v533 = vlaneseq
  %v534 = vshrl.u32 %v533, 7
  %v535 = vsub.s32 3, %v534
  %v536 = vrot.slane %v501, %v535
  %v537 = vlaneseq
  %v538 = vshrl.u32 %v537, 7
  %v539 = vsub.s32 3, %v538
  %v540 = vrot.slane %v505, %v539
  %v541 = vlaneseq
  %v542 = vshrl.u32 %v541, 7
  %v543 = vsub.s32 3, %v542
  %v544 = vrot.slane %v509, %v543
  %v545 = vmul.f32 %v472, %v520
  %v546 = vmul.f32 %v472, %v524
  %v547 = vmul.f32 %v472, %v528
  %v548 = vmul.f32 %v472, %v532
  %v549 = vmul.f32 %v472, %v536
  %v550 = vmul.f32 %v472, %v540
  %v551 = vmul.f32 %v472, %v544
  %v552 = vmul.f32 %v476, %v520
  %v553 = vmul.f32 %v476, %v524
  %v554 = vmul.f32 %v476, %v528
  %v555 = vmul.f32 %v476, %v532
  %v556 = vmul.f32 %v476, %v536
  %v557 = vmul.f32 %v476, %v540
  %v558 = vmul.f32 %v476, %v544
  %v559 = vmul.f32 %v480, %v520
  %v560 = vmul.f32 %v480, %v524
  %v561 = vmul.f32 %v480, %v528
  %v562 = vmul.f32 %v480, %v532
  %v563 = vmul.f32 %v480, %v536
  %v564 = vmul.f32 %v480, %v540
  %v565 = vmul.f32 %v480, %v544
  %v566 = vadd.f32 %v449, %v545
  %v567 = vadd.f32 %v450, %v546
  %v568 = vadd.f32 %v451, %v547
  %v569 = vadd.f32 %v452, %v548
  %v570 = vadd.f32 %v453, %v549
  %v571 = vadd.f32 %v454, %v550
  %v572 = vadd.f32 %v455, %v551
  %v573 = vadd.f32 %v456, %v552
  %v574 = vadd.f32 %v457, %v553
  %v575 = vadd.f32 %v458, %v554
  %v576 = vadd.f32 %v459, %v555
  %v577 = vadd.f32 %v460, %v556
  %v578 = vadd.f32 %v461, %v557
  %v579 = vadd.f32 %v462, %v558
  %v580 = vadd.f32 %v463, %v559
  %v581 = vadd.f32 %v464, %v560
  %v582 = vadd.f32 %v465, %v561
  %v583 = vadd.f32 %v466, %v562
  %v584 = vadd.f32 %v467, %v563
  %v585 = vadd.f32 %v468, %v564
  %v586 = vadd.f32 %v469, %v565
  %v588 = vlaneseq
  %v589 = vshrl.u32 %v588, 7
  %v590 = vsub.s32 0, %v589
  %v591 = vrot.slane %v33, %v590
  %v592 = vlaneseq
  %v593 = vshrl.u32 %v592, 7
  %v594 = vsub.s32 1, %v593
  %v595 = vrot.slane %v33, %v594
  %v596 = vlaneseq
  %v597 = vshrl.u32 %v596, 7
  %v598 = vsub.s32 2, %v597
  %v599 = vrot.slane %v33, %v598
  %v600 = vlaneseq
  %v601 = vshrl.u32 %v600, 7
  %v602 = vsub.s32 3, %v601
  %v603 = vrot.slane %v33, %v602
  %v604 = vlaneseq
  %v605 = vshrl.u32 %v604, 7
  %v606 = vsub.s32 4, %v605
  %v607 = vrot.slane %v33, %v606
  %v608 = vlaneseq
  %v609 = vshrl.u32 %v608, 7
  %v610 = vsub.s32 5, %v609
  %v611 = vrot.slane %v33, %v610
  %v612 = vlaneseq
  %v613 = vshrl.u32 %v612, 7
  %v614 = vsub.s32 6, %v613
  %v615 = vrot.slane %v33, %v614
  %v623 = vadd.f32 %v566, %v591
  %v624 = vadd.f32 %v567, %v595
  %v625 = vadd.f32 %v568, %v599
  %v626 = vadd.f32 %v569, %v603
  %v627 = vadd.f32 %v570, %v607
  %v628 = vadd.f32 %v571, %v611
  %v629 = vadd.f32 %v572, %v615
  %v630 = vadd.f32 %v573, %v591
  %v631 = vadd.f32 %v574, %v595
  %v632 = vadd.f32 %v575, %v599
  %v633 = vadd.f32 %v576, %v603
  %v634 = vadd.f32 %v577, %v607
  %v635 = vadd.f32 %v578, %v611
  %v636 = vadd.f32 %v579, %v615
  %v637 = vadd.f32 %v580, %v591
  %v638 = vadd.f32 %v581, %v595
  %v639 = vadd.f32 %v582, %v599
  %v640 = vadd.f32 %v583, %v603
  %v641 = vadd.f32 %v584, %v607
  %v642 = vadd.f32 %v585, %v611
  %v643 = vadd.f32 %v586, %v615
  %v644 = vmax.f32 %v623, 0.0
  %v645 = vmax.f32 %v624, 0.0
  %v646 = vmax.f32 %v625, 0.0
  %v647 = vmax.f32 %v626, 0.0
  %v648 = vmax.f32 %v627, 0.0
  %v649 = vmax.f32 %v628, 0.0
  %v650 = vmax.f32 %v630, 0.0
  %v651 = vmax.f32 %v631, 0.0
  %v652 = vmax.f32 %v632, 0.0
  %v653 = vmax.f32 %v633, 0.0
  %v654 = vmax.f32 %v634, 0.0
  %v655 = vmax.f32 %v635, 0.0
  %v656 = vmax.f32 %v637, 0.0
  %v657 = vmax.f32 %v638, 0.0
  %v658 = vmax.f32 %v639, 0.0
  %v659 = vmax.f32 %v640, 0.0
  %v660 = vmax.f32 %v641, 0.0
  %v661 = vmax.f32 %v642, 0.0
  %v663 = vlaneseq
  %v664 = vshrl.u32 %v663, 7
  %v665 = vsub.s32 0, %v664
  %v666 = vrot.slane %v130, %v665
  %668 = vmatprep.subr.mxu0 0.0
  %669 = vmatpush1.msra.mxu0 %v49
  %670 = vmatprep.subr.mxu0 0.0
  %671 = vmatpush1.msra.mxu0 %v48
  %672 = vmatprep.subr.mxu0 0.0
  %673 = vmatpush1.msra.mxu0 %v47
  %674 = vmatprep.subr.mxu0 0.0
  %675 = vmatpush1.msra.mxu0 %v46
  %676 = vmatprep.subr.mxu0 0.0
  %677 = vmatpush1.msra.mxu0 %v45
  %678 = vmatprep.subr.mxu0 0.0
  %679 = vmatpush1.msra.mxu0 %v44
  %680 = vmatprep.subr.mxu0 0.0
  %681 = vmatpush1.msra.mxu0 %v43
  %682 = vmatprep.subr.mxu0 0.0
  %683 = vmatpush1.msra.mxu0 %v42
  %684 = vmatprep.subr.mxu0 0.0
  %685 = vmatpush1.msra.mxu0 %v41
  %686 = vmatprep.subr.mxu0 0.0
  %687 = vmatpush1.msra.mxu0 %v40
  %688 = vmatprep.subr.mxu0 0.0
  %689 = vmatpush1.msra.mxu0 %v39
  %690 = vmatprep.subr.mxu0 0.0
  %691 = vmatpush1.msra.mxu0 %v38
  %692 = vmatprep.subr.mxu0 0.0
  %693 = vmatpush1.msra.mxu0 %v37
  %694 = vmatprep.subr.mxu0 0.0
  %695 = vmatpush1.msra.mxu0 %v36
  %696 = vmatprep.subr.mxu0 0.0
  %697 = vmatpush1.msra.mxu0 %v35
  %698 = vmatprep.subr.mxu0 0.0
  %699 = vmatpush1.msra.mxu0 %v34
  %700 = vmatprep.subr.mxu0 0.0
  %701 = vmatpush2.msra.mxu0 %v65
  %702 = vmatprep.subr.mxu0 0.0
  %703 = vmatpush2.msra.mxu0 %v64
  %704 = vmatprep.subr.mxu0 0.0
  %705 = vmatpush2.msra.mxu0 %v63
  %706 = vmatprep.subr.mxu0 0.0
  %707 = vmatpush2.msra.mxu0 %v62
  %708 = vmatprep.subr.mxu0 0.0
  %709 = vmatpush2.msra.mxu0 %v61
  %710 = vmatprep.subr.mxu0 0.0
  %711 = vmatpush2.msra.mxu0 %v60
  %712 = vmatprep.subr.mxu0 0.0
  %713 = vmatpush2.msra.mxu0 %v59
  %714 = vmatprep.subr.mxu0 0.0
  %715 = vmatpush2.msra.mxu0 %v58
  %716 = vmatprep.subr.mxu0 0.0
  %717 = vmatpush2.msra.mxu0 %v57
  %718 = vmatprep.subr.mxu0 0.0
  %719 = vmatpush2.msra.mxu0 %v56
  %720 = vmatprep.subr.mxu0 0.0
  %721 = vmatpush2.msra.mxu0 %v55
  %722 = vmatprep.subr.mxu0 0.0
  %723 = vmatpush2.msra.mxu0 %v54
  %724 = vmatprep.subr.mxu0 0.0
  %725 = vmatpush2.msra.mxu0 %v53
  %726 = vmatprep.subr.mxu0 0.0
  %727 = vmatpush2.msra.mxu0 %v52
  %728 = vmatprep.subr.mxu0 0.0
  %729 = vmatpush2.msra.mxu0 %v51
  %730 = vmatprep.subr.mxu0 0.0
  %731 = vmatpush2.msra.mxu0 %v50
  %732 = vmatprep.mubr.f32.mxu0 %v645
  %733 = vmatmul.mubr.f32.gmra.mxu0 %v644
  %v734 = vpop.f32.mrf.mxu0
  %v735 = vadd.f32 %v666, %v734
  %v736 = vpop.f32.mrf.mxu0
  %737 = vmatprep.mubr.f32.mxu0 %v651
  %738 = vmatmul.mubr.f32.gmra.mxu0 %v650
  %v739 = vpop.f32.mrf.mxu0
  %v740 = vadd.f32 %v666, %v739
  %v741 = vpop.f32.mrf.mxu0
  %742 = vmatprep.mubr.f32.mxu0 %v657
  %743 = vmatmul.mubr.f32.gmra.mxu0 %v656
  %v744 = vpop.f32.mrf.mxu0
  %v745 = vadd.f32 %v666, %v744
  %v746 = vpop.f32.mrf.mxu0
  %747 = vdwg.mxu0
  %748 = vmatprep.subr.mxu0 0.0
  %749 = vmatpush1.msra.mxu0 %v81
  %750 = vmatprep.subr.mxu0 0.0
  %751 = vmatpush1.msra.mxu0 %v80
  %752 = vmatprep.subr.mxu0 0.0
  %753 = vmatpush1.msra.mxu0 %v79
  %754 = vmatprep.subr.mxu0 0.0
  %755 = vmatpush1.msra.mxu0 %v78
  %756 = vmatprep.subr.mxu0 0.0
  %757 = vmatpush1.msra.mxu0 %v77
  %758 = vmatprep.subr.mxu0 0.0
  %759 = vmatpush1.msra.mxu0 %v76
  %760 = vmatprep.subr.mxu0 0.0
  %761 = vmatpush1.msra.mxu0 %v75
  %762 = vmatprep.subr.mxu0 0.0
  %763 = vmatpush1.msra.mxu0 %v74
  %764 = vmatprep.subr.mxu0 0.0
  %765 = vmatpush1.msra.mxu0 %v73
  %766 = vmatprep.subr.mxu0 0.0
  %767 = vmatpush1.msra.mxu0 %v72
  %768 = vmatprep.subr.mxu0 0.0
  %769 = vmatpush1.msra.mxu0 %v71
  %770 = vmatprep.subr.mxu0 0.0
  %771 = vmatpush1.msra.mxu0 %v70
  %772 = vmatprep.subr.mxu0 0.0
  %773 = vmatpush1.msra.mxu0 %v69
  %774 = vmatprep.subr.mxu0 0.0
  %775 = vmatpush1.msra.mxu0 %v68
  %776 = vmatprep.subr.mxu0 0.0
  %777 = vmatpush1.msra.mxu0 %v67
  %778 = vmatprep.subr.mxu0 0.0
  %779 = vmatpush1.msra.mxu0 %v66
  %780 = vmatprep.subr.mxu0 0.0
  %781 = vmatpush2.msra.mxu0 %v97
  %782 = vmatprep.subr.mxu0 0.0
  %783 = vmatpush2.msra.mxu0 %v96
  %784 = vmatprep.subr.mxu0 0.0
  %785 = vmatpush2.msra.mxu0 %v95
  %786 = vmatprep.subr.mxu0 0.0
  %787 = vmatpush2.msra.mxu0 %v94
  %788 = vmatprep.subr.mxu0 0.0
  %789 = vmatpush2.msra.mxu0 %v93
  %790 = vmatprep.subr.mxu0 0.0
  %791 = vmatpush2.msra.mxu0 %v92
  %792 = vmatprep.subr.mxu0 0.0
  %793 = vmatpush2.msra.mxu0 %v91
  %794 = vmatprep.subr.mxu0 0.0
  %795 = vmatpush2.msra.mxu0 %v90
  %796 = vmatprep.subr.mxu0 0.0
  %797 = vmatpush2.msra.mxu0 %v89
  %798 = vmatprep.subr.mxu0 0.0
  %799 = vmatpush2.msra.mxu0 %v88
  %800 = vmatprep.subr.mxu0 0.0
  %801 = vmatpush2.msra.mxu0 %v87
  %802 = vmatprep.subr.mxu0 0.0
  %803 = vmatpush2.msra.mxu0 %v86
  %804 = vmatprep.subr.mxu0 0.0
  %805 = vmatpush2.msra.mxu0 %v85
  %806 = vmatprep.subr.mxu0 0.0
  %807 = vmatpush2.msra.mxu0 %v84
  %808 = vmatprep.subr.mxu0 0.0
  %809 = vmatpush2.msra.mxu0 %v83
  %810 = vmatprep.subr.mxu0 0.0
  %811 = vmatpush2.msra.mxu0 %v82
  %812 = vmatprep.mubr.f32.mxu0 %v647
  %813 = vmatmul.mubr.f32.gmra.mxu0 %v646
  %v814 = vpop.f32.mrf.mxu0
  %v815 = vadd.f32 %v735, %v814
  %v816 = vpop.f32.mrf.mxu0
  %817 = vmatprep.mubr.f32.mxu0 %v653
  %818 = vmatmul.mubr.f32.gmra.mxu0 %v652
  %v819 = vpop.f32.mrf.mxu0
  %v820 = vadd.f32 %v740, %v819
  %v821 = vpop.f32.mrf.mxu0
  %822 = vmatprep.mubr.f32.mxu0 %v659
  %823 = vmatmul.mubr.f32.gmra.mxu0 %v658
  %v824 = vpop.f32.mrf.mxu0
  %v825 = vadd.f32 %v745, %v824
  %v826 = vpop.f32.mrf.mxu0
  %827 = vdwg.mxu0
  %828 = vmatprep.subr.mxu0 0.0
  %829 = vmatpush1.msra.mxu0 %v113
  %830 = vmatprep.subr.mxu0 0.0
  %831 = vmatpush1.msra.mxu0 %v112
  %832 = vmatprep.subr.mxu0 0.0
  %833 = vmatpush1.msra.mxu0 %v111
  %834 = vmatprep.subr.mxu0 0.0
  %835 = vmatpush1.msra.mxu0 %v110
  %836 = vmatprep.subr.mxu0 0.0
  %837 = vmatpush1.msra.mxu0 %v109
  %838 = vmatprep.subr.mxu0 0.0
  %839 = vmatpush1.msra.mxu0 %v108
  %840 = vmatprep.subr.mxu0 0.0
  %841 = vmatpush1.msra.mxu0 %v107
  %842 = vmatprep.subr.mxu0 0.0
  %843 = vmatpush1.msra.mxu0 %v106
  %844 = vmatprep.subr.mxu0 0.0
  %845 = vmatpush1.msra.mxu0 %v105
  %846 = vmatprep.subr.mxu0 0.0
  %847 = vmatpush1.msra.mxu0 %v104
  %848 = vmatprep.subr.mxu0 0.0
  %849 = vmatpush1.msra.mxu0 %v103
  %850 = vmatprep.subr.mxu0 0.0
  %851 = vmatpush1.msra.mxu0 %v102
  %852 = vmatprep.subr.mxu0 0.0
  %853 = vmatpush1.msra.mxu0 %v101
  %854 = vmatprep.subr.mxu0 0.0
  %855 = vmatpush1.msra.mxu0 %v100
  %856 = vmatprep.subr.mxu0 0.0
  %857 = vmatpush1.msra.mxu0 %v99
  %858 = vmatprep.subr.mxu0 0.0
  %859 = vmatpush1.msra.mxu0 %v98
  %860 = vmatprep.subr.mxu0 0.0
  %861 = vmatpush2.msra.mxu0 %v129
  %862 = vmatprep.subr.mxu0 0.0
  %863 = vmatpush2.msra.mxu0 %v128
  %864 = vmatprep.subr.mxu0 0.0
  %865 = vmatpush2.msra.mxu0 %v127
  %866 = vmatprep.subr.mxu0 0.0
  %867 = vmatpush2.msra.mxu0 %v126
  %868 = vmatprep.subr.mxu0 0.0
  %869 = vmatpush2.msra.mxu0 %v125
  %870 = vmatprep.subr.mxu0 0.0
  %871 = vmatpush2.msra.mxu0 %v124
  %872 = vmatprep.subr.mxu0 0.0
  %873 = vmatpush2.msra.mxu0 %v123
  %874 = vmatprep.subr.mxu0 0.0
  %875 = vmatpush2.msra.mxu0 %v122
  %876 = vmatprep.subr.mxu0 0.0
  %877 = vmatpush2.msra.mxu0 %v121
  %878 = vmatprep.subr.mxu0 0.0
  %879 = vmatpush2.msra.mxu0 %v120
  %880 = vmatprep.subr.mxu0 0.0
  %881 = vmatpush2.msra.mxu0 %v119
  %882 = vmatprep.subr.mxu0 0.0
  %883 = vmatpush2.msra.mxu0 %v118
  %884 = vmatprep.subr.mxu0 0.0
  %885 = vmatpush2.msra.mxu0 %v117
  %886 = vmatprep.subr.mxu0 0.0
  %887 = vmatpush2.msra.mxu0 %v116
  %888 = vmatprep.subr.mxu0 0.0
  %889 = vmatpush2.msra.mxu0 %v115
  %890 = vmatprep.subr.mxu0 0.0
  %891 = vmatpush2.msra.mxu0 %v114
  %892 = vmatprep.mubr.f32.mxu0 %v649
  %893 = vmatmul.mubr.f32.gmra.mxu0 %v648
  %v894 = vpop.f32.mrf.mxu0
  %v895 = vadd.f32 %v815, %v894
  %v896 = vpop.f32.mrf.mxu0
  %897 = vmatprep.mubr.f32.mxu0 %v655
  %898 = vmatmul.mubr.f32.gmra.mxu0 %v654
  %v899 = vpop.f32.mrf.mxu0
  %v900 = vadd.f32 %v820, %v899
  %v901 = vpop.f32.mrf.mxu0
  %902 = vmatprep.mubr.f32.mxu0 %v661
  %903 = vmatmul.mubr.f32.gmra.mxu0 %v660
  %v904 = vpop.f32.mrf.mxu0
  %v905 = vadd.f32 %v825, %v904
  %v906 = vpop.f32.mrf.mxu0
  %907 = vdwg.mxu0
  %v908 = vadd.f32 %v895, %v629
  %v909 = vadd.f32 %v900, %v636
  %v910 = vadd.f32 %v905, %v643
  %vm911 = vcmask 15360
  %v912 = vsel %vm911, %v908, 0.0
  %913 = vadd.xlane.f32.xlu0 %v912
  %v914 = vpop.xlane.xlu0 %913
  %v915 = vsel %vm911, %v909, 0.0
  %916 = vadd.xlane.f32.xlu0 %v915
  %v917 = vpop.xlane.xlu0 %916
  %v918 = vsel %vm911, %v910, 0.0
  %919 = vadd.xlane.f32.xlu0 %v918
  %v920 = vpop.xlane.xlu0 %919
  %v921 = vrcp.pop 2.0
  %v922 = vmul.f32 %v914, %v921
  %v923 = vmul.f32 %v917, %v921
  %v924 = vmul.f32 %v920, %v921
  %v925 = vsub.f32 %v908, %v922
  %v926 = vsub.f32 %v909, %v923
  %v927 = vsub.f32 %v910, %v924
  %v928 = vmul.f32 %v925, %v925
  %v929 = vmul.f32 %v926, %v926
  %v930 = vmul.f32 %v927, %v927
  %v931 = vsel %vm911, %v928, 0.0
  %932 = vadd.xlane.f32.xlu0 %v931
  %v933 = vpop.xlane.xlu0 %932
  %v934 = vsel %vm911, %v929, 0.0
  %935 = vadd.xlane.f32.xlu0 %v934
  %v936 = vpop.xlane.xlu0 %935
  %v937 = vsel %vm911, %v930, 0.0
  %938 = vadd.xlane.f32.xlu0 %v937
  %v939 = vpop.xlane.xlu0 %938
  %v940 = vmul.f32 %v933, %v921
  %v941 = vmul.f32 %v936, %v921
  %v942 = vmul.f32 %v939, %v921
  %v943 = vadd.f32 %v940, 1e-05
  %v944 = vadd.f32 %v941, 1e-05
  %v945 = vadd.f32 %v942, 1e-05
  %v946 = vrsqrt.pop %v943
  %v947 = vrsqrt.pop %v944
  %v948 = vrsqrt.pop %v945
  %v949 = vmul.f32 %v925, %v946
  %v950 = vmul.f32 %v926, %v947
  %v951 = vmul.f32 %v927, %v948
  %v953 = vlaneseq
  %v954 = vshrl.u32 %v953, 7
  %v955 = vsub.s32 0, %v954
  %v956 = vrot.slane %v131, %v955
  %v958 = vmul.f32 %v949, %v956
  %v959 = vmul.f32 %v950, %v956
  %v960 = vmul.f32 %v951, %v956
  %v962 = vlaneseq
  %v963 = vshrl.u32 %v962, 7
  %v964 = vsub.s32 0, %v963
  %v965 = vrot.slane %v132, %v964
  %v967 = vadd.f32 %v958, %v965
  %v968 = vadd.f32 %v959, %v965
  %v969 = vadd.f32 %v960, %v965
  %970 = vst.msk [vmem:[%s7] sm:$0xff] %vm911, %v967
  %971 = vst.msk [vmem:[%s7 + $0x8] sm:$0xff] %vm911, %v968
  %972 = vst.msk [vmem:[%s7 + $0x10] sm:$0xff] %vm911, %v969
  // Predicated region
  $region30: #{tpu_custom_call.1} parent=0 // pred_check
    _
  $region31: #{tpu_custom_call.1} parent=0 // pred_check_branch
    %974 = sbr.rel (0) target = $region33
  $region32: #{tpu_custom_call.1} parent=0 // pred_region
    _
  $region33: #{tpu_custom_call.1} parent=0 // pred_fallthru
    _
  // Predicated region
  $region34: #{tpu_custom_call.1} parent=0 // pred_check
    _
  $region35: #{tpu_custom_call.1} parent=0 // pred_check_branch
    %976 = sbr.rel (0) target = $region37
  $region36: #{tpu_custom_call.1} parent=0 // pred_region
    _
  $region37: #{tpu_custom_call.1} parent=0 // pred_fallthru
    _

</llo_original>
